<compile_context>
chip_gen: v7x
topology: tpu7x:2x2x1
jax: 0.10.0
libtpu: 0.0.40
codegen_flags: <defaults>
</compile_context>

<pallas_src>
import jax
import jax.numpy as jnp
from jax.experimental import pallas as pl
from jax.experimental.pallas import tpu as pltpu


def mlp_kernel(x_ref, w1_ref, b1_ref, w2_ref, b2_ref, w3_ref, b3_ref, o_ref):
    """Fused 3-layer MLP forward, batch on the lane (last) axis.

    x_ref : (4, T)   activations, batch on lanes
    w1_ref: (16, 4)  b1_ref: (16, 1)
    w2_ref: (16, 16) b2_ref: (16, 1)
    w3_ref: (1, 16)  b3_ref: (1,)  scalar in SMEM
    o_ref : (1, T)   lane-dense output row
    """
    x = x_ref[...]                                            # (4, T)

    # fc1 + LeakyReLU(0.001):  (16,4) @ (4,T) -> (16,T)
    h1 = jnp.dot(w1_ref[...], x, preferred_element_type=jnp.float32) + b1_ref[...]
    h1 = jnp.maximum(h1, 0.001 * h1)                          # == LeakyReLU(0.001)

    # fc2 + LeakyReLU(0.001):  (16,16) @ (16,T) -> (16,T)
    h2 = jnp.dot(w2_ref[...], h1, preferred_element_type=jnp.float32) + b2_ref[...]
    h2 = jnp.maximum(h2, 0.001 * h2)

    # fc3 + tanh + *2:  (1,16) @ (16,T) -> (1,T); bias is a scalar from SMEM
    h3 = jnp.dot(w3_ref[...], h2, preferred_element_type=jnp.float32) + b3_ref[0]
    o_ref[...] = (jnp.tanh(h3) * 2.0).astype(o_ref.dtype)


def _round_up(v, m):
    return pl.cdiv(v, m) * m


def _pick_tile(batch, lane_tile):
    """Pick the lane (batch) tile size and padded batch.

    Big tiles amortize the ~0.35 us per-grid-step cost; but if the whole batch
    fits in one tile and is reasonably large, split it in two so the "parallel"
    batch axis has >= 2 grid steps (v7x megacore: otherwise one TC idles).
    """
    lane_tile = max(512, _round_up(lane_tile, 512))
    b512 = _round_up(max(batch, 1), 512)
    if b512 <= lane_tile:
        t = _round_up(pl.cdiv(b512, 2), 512) if b512 >= 1024 else b512
    else:
        t = lane_tile
    b_pad = _round_up(max(batch, 1), t)
    return t, b_pad


def _run_kernel(x_fm, params, t):
    """x_fm: (4, B_pad) feature-major, B_pad a multiple of t -> (1, B_pad)."""
    w1, b1, w2, b2, w3, b3 = params
    b_pad = x_fm.shape[1]

    # Double-buffered VMEM footprint of the pipelined blocks:
    #   (4,t) input and (1,t) output both sublane-pad to 8 rows -> 32*t B each,
    #   x2 buffers each -> ~128*t B; weights/biases are negligible.
    vmem_bytes = 128 * t + (1 << 16)
    cp_kwargs = dict(dimension_semantics=("parallel",))
    if vmem_bytes > (12 << 20):  # only override v5e's 16 MiB default when needed
        cp_kwargs["vmem_limit_bytes"] = min(int(vmem_bytes * 1.5) + (1 << 20), 48 << 20)

    return pl.pallas_call(
        mlp_kernel,
        out_shape=jax.ShapeDtypeStruct((1, b_pad), jnp.float32),
        grid=(b_pad // t,),
        in_specs=[
            # activations: tiled along the lane/batch axis
            pl.BlockSpec((4, t), lambda i: (0, i)),
            # weights / biases: resident (constant block index every step)
            pl.BlockSpec((16, 4), lambda i: (0, 0)),
            pl.BlockSpec((16, 1), lambda i: (0, 0)),
            pl.BlockSpec((16, 16), lambda i: (0, 0)),
            pl.BlockSpec((16, 1), lambda i: (0, 0)),
            pl.BlockSpec((1, 16), lambda i: (0, 0)),
            # scalar bias via SMEM (no padded VMEM tile, no pipelined DMA)
            pl.BlockSpec(memory_space=pltpu.SMEM),
        ],
        out_specs=pl.BlockSpec((1, t), lambda i: (0, i)),
        compiler_params=pltpu.CompilerParams(**cp_kwargs),
    )(x_fm, w1, b1, w2, b2, w3, b3)


def simple_nn_forward_feature_major(x_fm, params, *, lane_tile=32768):
    """Preferred entry point: x_fm is already (4, B) feature-major.

    Avoids the transpose/pad HBM round trip entirely (only a tail pad to a
    multiple of the lane tile, if needed). Returns (1, B) lane-dense output.
    """
    B = x_fm.shape[1]
    t, b_pad = _pick_tile(B, lane_tile)
    if b_pad != B:
        x_fm = jnp.zeros((4, b_pad), x_fm.dtype).at[:, :B].set(x_fm)
    out = _run_kernel(x_fm, params, t)
    return out[:, :B]


def simple_nn_forward(x, params, *, lane_tile=32768):
    """Convenience wrapper: x is PyTorch-style (B, 4) -> (B, 1).

    For large-B production use, feed feature-major data to
    simple_nn_forward_feature_major (or fuse this transpose into the producer
    inside the same jit) so the repack doesn't become a standalone HBM pass.
    """
    B = x.shape[0]
    t, b_pad = _pick_tile(B, lane_tile)
    x_fm = jnp.zeros((4, b_pad), x.dtype).at[:, :B].set(x.T)
    out = _run_kernel(x_fm, params, t)
    return out[0, :B].reshape(B, 1)


def init_params(key):
    """Deterministic init matching PyTorch nn.Linear shapes.

    Weights are stored PyTorch-native (out_features, in_features); biases as
    (out_features, 1) columns so they broadcast along the lane/batch axis.
    b3 is a 1-element vector (scalar) destined for SMEM.
    """
    k1, k2, k3, k4, k5, k6 = jax.random.split(key, 6)

    def u(k, shape, fan_in):
        bound = 1.0 / jnp.sqrt(fan_in)
        return jax.random.uniform(k, shape, jnp.float32, -bound, bound)

    w1 = u(k1, (16, 4), 4.0)
    b1 = u(k2, (16, 1), 4.0)
    w2 = u(k3, (16, 16), 16.0)
    b2 = u(k4, (16, 1), 16.0)
    w3 = u(k5, (1, 16), 16.0)
    b3 = u(k6, (1,), 16.0)
    return (w1, b1, w2, b2, w3, b3)


def reference_forward(x, params):
    """Pure-JAX reference of the PyTorch forward for a sanity check."""
    w1, b1, w2, b2, w3, b3 = params
    lrelu = lambda v: jnp.where(v > 0, v, 0.001 * v)
    h = lrelu(x @ w1.T + b1[:, 0])
    h = lrelu(h @ w2.T + b2[:, 0])
    h = h @ w3.T + b3
    return jnp.tanh(h) * 2.0


if __name__ == "__main__":
    key = jax.random.PRNGKey(0)
    kx, kp = jax.random.split(key)

    B = 8  # small demo batch (kernel pads to one 512-wide lane tile)
    x = jax.random.normal(kx, (B, 4), dtype=jnp.float32)
    params = init_params(kp)

    # (B, 4) convenience path
    out = simple_nn_forward(x, params)
    out = jax.block_until_ready(out)
    ref = reference_forward(x, params)
    assert out.shape == (B, 1)
    assert jnp.allclose(out, ref, atol=1e-5, rtol=1e-5)

    # feature-major path (no transpose/pad pass) must agree too
    out_fm = simple_nn_forward_feature_major(x.T, params)
    out_fm = jax.block_until_ready(out_fm)
    assert out_fm.shape == (1, B)
    assert jnp.allclose(out_fm[0].reshape(B, 1), ref, atol=1e-5, rtol=1e-5)

    print("KERNEL_OK")
</pallas_src>

<mosaic_0001>
module attributes {stable_mosaic.version = 11 : i64} {
  func.func @mlp_kernel(%arg0: i32, %arg1: memref<4x512xf32, #tpu.memory_space<vmem>>, %arg2: memref<16x4xf32, #tpu.memory_space<vmem>>, %arg3: memref<16x1xf32, #tpu.memory_space<vmem>>, %arg4: memref<16x16xf32, #tpu.memory_space<vmem>>, %arg5: memref<16x1xf32, #tpu.memory_space<vmem>>, %arg6: memref<1x16xf32, #tpu.memory_space<vmem>>, %arg7: memref<1xf32, #tpu.memory_space<smem>>, %arg8: memref<1x512xf32, #tpu.memory_space<vmem>>) attributes {dimension_semantics = [#tpu.dimension_semantics<parallel>], iteration_bounds = array<i64: 1>, scalar_prefetch = 0 : i64, scratch_operands = 0 : i64, tpu.core_type = #tpu.core_type<tc>, window_params = [{transform_indices = @transform_0, window_bounds = array<i64: 4, 512>}, {pipeline_mode = #tpu.pipeline_mode<synchronous>, transform_indices = @transform_1, window_bounds = array<i64: 16, 4>}, {pipeline_mode = #tpu.pipeline_mode<synchronous>, transform_indices = @transform_2, window_bounds = array<i64: 16, 1>}, {pipeline_mode = #tpu.pipeline_mode<synchronous>, transform_indices = @transform_3, window_bounds = array<i64: 16, 16>}, {pipeline_mode = #tpu.pipeline_mode<synchronous>, transform_indices = @transform_4, window_bounds = array<i64: 16, 1>}, {pipeline_mode = #tpu.pipeline_mode<synchronous>, transform_indices = @transform_5, window_bounds = array<i64: 1, 16>}, {transform_indices = @transform_6, window_bounds = array<i64: 1>}, {transform_indices = @transform_7, window_bounds = array<i64: 1, 512>}]} {
    %c0 = arith.constant 0 : index
    %c0_0 = arith.constant 0 : index
    %0 = vector.load %arg1[%c0, %c0_0] : memref<4x512xf32, #tpu.memory_space<vmem>>, vector<4x512xf32>
    %c0_1 = arith.constant 0 : index
    %c0_2 = arith.constant 0 : index
    %1 = vector.load %arg2[%c0_1, %c0_2] : memref<16x4xf32, #tpu.memory_space<vmem>>, vector<16x4xf32>
    %cst = arith.constant dense<0.000000e+00> : vector<16x512xf32>
    %2 = tpu.matmul %1, %0, %cst {dimension_numbers = #tpu.dot_dimension_numbers<[1], [0], [0], [1], [0, 0, 1, 1], [], []>} : vector<16x4xf32>, vector<4x512xf32>, vector<16x512xf32> -> vector<16x512xf32>
    %c0_3 = arith.constant 0 : index
    %c0_4 = arith.constant 0 : index
    %3 = vector.load %arg3[%c0_3, %c0_4] : memref<16x1xf32, #tpu.memory_space<vmem>>, vector<16x1xf32>
    %4 = vector.broadcast %3 : vector<16x1xf32> to vector<16x512xf32>
    %5 = arith.addf %2, %4 : vector<16x512xf32>
    %cst_5 = arith.constant 1.000000e-03 : f32
    %6 = vector.broadcast %cst_5 : f32 to vector<16x512xf32>
    %7 = arith.mulf %6, %5 : vector<16x512xf32>
    %8 = arith.maximumf %5, %7 : vector<16x512xf32>
    %c0_6 = arith.constant 0 : index
    %c0_7 = arith.constant 0 : index
    %9 = vector.load %arg4[%c0_6, %c0_7] : memref<16x16xf32, #tpu.memory_space<vmem>>, vector<16x16xf32>
    %cst_8 = arith.constant dense<0.000000e+00> : vector<16x512xf32>
    %10 = tpu.matmul %9, %8, %cst_8 {dimension_numbers = #tpu.dot_dimension_numbers<[1], [0], [0], [1], [0, 0, 1, 1], [], []>} : vector<16x16xf32>, vector<16x512xf32>, vector<16x512xf32> -> vector<16x512xf32>
    %c0_9 = arith.constant 0 : index
    %c0_10 = arith.constant 0 : index
    %11 = vector.load %arg5[%c0_9, %c0_10] : memref<16x1xf32, #tpu.memory_space<vmem>>, vector<16x1xf32>
    %12 = vector.broadcast %11 : vector<16x1xf32> to vector<16x512xf32>
    %13 = arith.addf %10, %12 : vector<16x512xf32>
    %cst_11 = arith.constant 1.000000e-03 : f32
    %14 = vector.broadcast %cst_11 : f32 to vector<16x512xf32>
    %15 = arith.mulf %14, %13 : vector<16x512xf32>
    %16 = arith.maximumf %13, %15 : vector<16x512xf32>
    %c0_12 = arith.constant 0 : index
    %c0_13 = arith.constant 0 : index
    %17 = vector.load %arg6[%c0_12, %c0_13] : memref<1x16xf32, #tpu.memory_space<vmem>>, vector<1x16xf32>
    %cst_14 = arith.constant dense<0.000000e+00> : vector<1x512xf32>
    %18 = tpu.matmul %17, %16, %cst_14 {dimension_numbers = #tpu.dot_dimension_numbers<[1], [0], [0], [1], [0, 0, 1, 1], [], []>} : vector<1x16xf32>, vector<16x512xf32>, vector<1x512xf32> -> vector<1x512xf32>
    %c0_15 = arith.constant 0 : index
    %19 = memref.load %arg7[%c0_15] : memref<1xf32, #tpu.memory_space<smem>>
    %20 = vector.broadcast %19 : f32 to vector<1x512xf32>
    %21 = arith.addf %18, %20 : vector<1x512xf32>
    %22 = math.tanh %21 : vector<1x512xf32>
    %cst_16 = arith.constant 2.000000e+00 : f32
    %23 = vector.broadcast %cst_16 : f32 to vector<1x512xf32>
    %24 = arith.mulf %22, %23 : vector<1x512xf32>
    %c0_17 = arith.constant 0 : index
    %c0_18 = arith.constant 0 : index
    %25 = vector.load %arg8[%c0_17, %c0_18] : memref<1x512xf32, #tpu.memory_space<vmem>>, vector<1x512xf32>
    tpu.vector_store %arg8[%c0_17, %c0_18], %24 {strides = array<i32>} : memref<1x512xf32, #tpu.memory_space<vmem>>, vector<1x512xf32>,
    return
  }
  func.func @transform_0(%arg0: i32) -> (i32, i32) {
    %c0_i32 = arith.constant 0 : i32
    %c0_i32_0 = arith.constant 0 : i32
    return %c0_i32, %arg0 : i32, i32
  }
  func.func @transform_1(%arg0: i32) -> (i32, i32) {
    %c0_i32 = arith.constant 0 : i32
    %c0_i32_0 = arith.constant 0 : i32
    %c0_i32_1 = arith.constant 0 : i32
    return %c0_i32, %c0_i32_0 : i32, i32
  }
  func.func @transform_2(%arg0: i32) -> (i32, i32) {
    %c0_i32 = arith.constant 0 : i32
    %c0_i32_0 = arith.constant 0 : i32
    %c0_i32_1 = arith.constant 0 : i32
    return %c0_i32, %c0_i32_0 : i32, i32
  }
  func.func @transform_3(%arg0: i32) -> (i32, i32) {
    %c0_i32 = arith.constant 0 : i32
    %c0_i32_0 = arith.constant 0 : i32
    %c0_i32_1 = arith.constant 0 : i32
    return %c0_i32, %c0_i32_0 : i32, i32
  }
  func.func @transform_4(%arg0: i32) -> (i32, i32) {
    %c0_i32 = arith.constant 0 : i32
    %c0_i32_0 = arith.constant 0 : i32
    %c0_i32_1 = arith.constant 0 : i32
    return %c0_i32, %c0_i32_0 : i32, i32
  }
  func.func @transform_5(%arg0: i32) -> (i32, i32) {
    %c0_i32 = arith.constant 0 : i32
    %c0_i32_0 = arith.constant 0 : i32
    %c0_i32_1 = arith.constant 0 : i32
    return %c0_i32, %c0_i32_0 : i32, i32
  }
  func.func @transform_6(%arg0: i32) -> i32 {
    %c0_i32 = arith.constant 0 : i32
    %c0_i32_0 = arith.constant 0 : i32
    return %c0_i32 : i32
  }
  func.func @transform_7(%arg0: i32) -> (i32, i32) {
    %c0_i32 = arith.constant 0 : i32
    %c0_i32_0 = arith.constant 0 : i32
    return %c0_i32, %arg0 : i32, i32
  }
}

</mosaic_0001>

<llo_original>
// kernel: tpu_custom_call.1
$region0: #{tpu_custom_call.1}
  #allocation0 [shape = 'u32[]', space=smem, size = 0x4, offset = 0x4, fixed_abs, tag = 'smem constant byte address 0x4 - core index']
  #allocation1 [shape = 'u32[144,128]{1,0:T(1,128)}', space=vmem, size = 0x12000, scoped, tag = 'internal scratch']
  #allocation2 [shape = 'f32[1]{0:T(128)S(6)}', space=smem, size = 0x200, scoped, tag = 'scoped memory for tpu_custom_call.1']
  %s0 = inlined_call_operand.vmem [shape: f32[4,512], index: 0, kind: input, shape index: {}]
  %s1 = inlined_call_operand.vmem [shape: f32[16,4], index: 1, kind: input, shape index: {}]
  %s2 = inlined_call_operand.vmem [shape: f32[16,1], index: 2, kind: input, shape index: {}]
  %s3 = inlined_call_operand.vmem [shape: f32[16,16], index: 3, kind: input, shape index: {}]
  %s4 = inlined_call_operand.vmem [shape: f32[16,1], index: 4, kind: input, shape index: {}]
  %s5 = inlined_call_operand.vmem [shape: f32[1,16], index: 5, kind: input, shape index: {}]
  %s6 = inlined_call_operand.<no memory space> [shape: f32[1], index: 6, kind: input, shape index: {}]
  %s7 = inlined_call_operand.hbm [shape: f32[1,512], index: 7, kind: output, shape index: {}]
  %s8 = sld [smem:[#allocation0]]
  $region38: #{tpu_custom_call.1} parent=0
    _
  %s10 = ssub.s32 1, %s8
  %s11 = scalar_select 0, %s10, %s8
  %12 = sst [smem:[#allocation2]] %s6
  $region1: #{tpu_custom_call.1} parent=0
    #allocation3 [shape = 'u8[2048]{0}', space=vmem, size = 0x800, scoped, tag = 'output window, operand 0, single buffered']
    #allocation4 [shape = 's32[1]{0}', space=sflag, size = 0x4, scoped, tag = 'scoped memory for tpu_custom_call.1']
    %13 = vsyncpa [#allocation4], 0
    // Predicated region
    $region2: #{tpu_custom_call.1} parent=1 // pred_check
      _
    $region3: #{tpu_custom_call.1} parent=1 // pred_check_branch
      %15 = sbr.rel (0) target = $region5
    $region4: #{tpu_custom_call.1} parent=1 // pred_region
      _
    $region5: #{tpu_custom_call.1} parent=1 // pred_fallthru
      _
    // Predicated region
    $region6: #{tpu_custom_call.1} parent=1 // pred_check
      _
    $region7: #{tpu_custom_call.1} parent=1 // pred_check_branch
      %17 = sbr.rel (0) target = $region9
    $region8: #{tpu_custom_call.1} parent=1 // pred_region
      _
    $region9: #{tpu_custom_call.1} parent=1 // pred_fallthru
      _
    // Predicated region
    $region10: #{tpu_custom_call.1} parent=1 // pred_check
      _
    $region11: #{tpu_custom_call.1} parent=1 // pred_check_branch
      %19 = sbr.rel (0) target = $region13
    $region12: #{tpu_custom_call.1} parent=1 // pred_region
      _
    $region13: #{tpu_custom_call.1} parent=1 // pred_fallthru
      _
    // Predicated region
    $region14: #{tpu_custom_call.1} parent=1 // pred_check
      _
    $region15: #{tpu_custom_call.1} parent=1 // pred_check_branch
      %21 = sbr.rel (0) target = $region17
    $region16: #{tpu_custom_call.1} parent=1 // pred_region
      _
    $region17: #{tpu_custom_call.1} parent=1 // pred_fallthru
      _
    // Predicated region
    $region18: #{tpu_custom_call.1} parent=1 // pred_check
      _
    $region19: #{tpu_custom_call.1} parent=1 // pred_check_branch
      %23 = sbr.rel (0) target = $region21
    $region20: #{tpu_custom_call.1} parent=1 // pred_region
      _
    $region21: #{tpu_custom_call.1} parent=1 // pred_fallthru
      _
    // Predicated region
    $region22: #{tpu_custom_call.1} parent=1 // pred_check
      _
    $region23: #{tpu_custom_call.1} parent=1 // pred_check_branch
      %25 = sbr.rel (0) target = $region25
    $region24: #{tpu_custom_call.1} parent=1 // pred_region
      _
    $region25: #{tpu_custom_call.1} parent=1 // pred_fallthru
      _
    // Predicated region
    $region26: #{tpu_custom_call.1} parent=1 // pred_check
      _
    $region27: #{tpu_custom_call.1} parent=1 // pred_check_branch
      %27 = sbr.rel (0) target = $region29
    $region28: #{tpu_custom_call.1} parent=1 // pred_region
      _
    $region29: #{tpu_custom_call.1} parent=1 // pred_fallthru
      _
    %v28 = vld [vmem:[%s0] sm:$0xff]
    %v29 = vld [vmem:[%s0 + $0x8] sm:$0xff]
    %v30 = vld [vmem:[%s1] sm:$0xff]
    %v31 = vld [vmem:[%s1 + $0x8] sm:$0xff]
    %v32 = vld [vmem:[%s2] sm:$0xff]
    %v33 = vld [vmem:[%s2 + $0x8] sm:$0xff]
    %35 = vset.pattern.permute.xlu0 0
    %36 = vperm.xlu0 %35, %v32
    %v37 = vpop.permute.xlu0 %36
    %40 = vset.pattern.permute.xlu0 0
    %41 = vperm.xlu0 %40, %v33
    %v42 = vpop.permute.xlu0 %41
    %v46 = vcombine.high %v28, %v28
    %v47 = vcombine.high %v29, %v29
    %vm48 = vcmask 31744
    %v50 = vsel %vm48, %v30, 0
    %v53 = vsel %vm48, %v31, 0
    %vm55 = vcmask 1043456
    %v56 = vsel %vm55, %v28, 0
    %v58 = vsel %vm55, %v46, 0
    %v60 = vsel %vm55, %v29, 0
    %v62 = vsel %vm55, %v47, 0
    %64 = vmatprep.subr.mxu0 %v58
    %65 = vmatpush1.msra.mxu0 %v56
    %66 = vmatprep.subr.mxu0 0.0
    %67 = vmatpush1.msra.mxu0 0.0
    %68 = vmatprep.subr.mxu0 0.0
    %69 = vmatpush1.msra.mxu0 0.0
    %70 = vmatprep.subr.mxu0 0.0
    %71 = vmatpush1.msra.mxu0 0.0
    %72 = vmatprep.subr.mxu0 0.0
    %73 = vmatpush1.msra.mxu0 0.0
    %74 = vmatprep.subr.mxu0 0.0
    %75 = vmatpush1.msra.mxu0 0.0
    %76 = vmatprep.subr.mxu0 0.0
    %77 = vmatpush1.msra.mxu0 0.0
    %78 = vmatprep.subr.mxu0 0.0
    %79 = vmatpush1.msra.mxu0 0.0
    %80 = vmatprep.subr.mxu0 0.0
    %81 = vmatpush1.msra.mxu0 0.0
    %82 = vmatprep.subr.mxu0 0.0
    %83 = vmatpush1.msra.mxu0 0.0
    %84 = vmatprep.subr.mxu0 0.0
    %85 = vmatpush1.msra.mxu0 0.0
    %86 = vmatprep.subr.mxu0 0.0
    %87 = vmatpush1.msra.mxu0 0.0
    %88 = vmatprep.subr.mxu0 0.0
    %89 = vmatpush1.msra.mxu0 0.0
    %90 = vmatprep.subr.mxu0 0.0
    %91 = vmatpush1.msra.mxu0 0.0
    %92 = vmatprep.subr.mxu0 0.0
    %93 = vmatpush1.msra.mxu0 0.0
    %94 = vmatprep.subr.mxu0 0.0
    %95 = vmatpush1.msra.mxu0 0.0
    %96 = vmatprep.subr.mxu0 0.0
    %97 = vmatpush1.msra.mxu0 0.0
    %98 = vmatprep.subr.mxu0 0.0
    %99 = vmatpush1.msra.mxu0 0.0
    %100 = vmatprep.subr.mxu0 0.0
    %101 = vmatpush1.msra.mxu0 0.0
    %102 = vmatprep.subr.mxu0 0.0
    %103 = vmatpush1.msra.mxu0 0.0
    %104 = vmatprep.subr.mxu0 0.0
    %105 = vmatpush1.msra.mxu0 0.0
    %106 = vmatprep.subr.mxu0 0.0
    %107 = vmatpush1.msra.mxu0 0.0
    %108 = vmatprep.subr.mxu0 0.0
    %109 = vmatpush1.msra.mxu0 0.0
    %110 = vmatprep.subr.mxu0 0.0
    %111 = vmatpush1.msra.mxu0 0.0
    %112 = vmatprep.subr.mxu0 0.0
    %113 = vmatpush1.msra.mxu0 0.0
    %114 = vmatprep.subr.mxu0 0.0
    %115 = vmatpush1.msra.mxu0 0.0
    %116 = vmatprep.subr.mxu0 0.0
    %117 = vmatpush1.msra.mxu0 0.0
    %118 = vmatprep.subr.mxu0 0.0
    %119 = vmatpush1.msra.mxu0 0.0
    %120 = vmatprep.subr.mxu0 0.0
    %121 = vmatpush1.msra.mxu0 0.0
    %122 = vmatprep.subr.mxu0 0.0
    %123 = vmatpush1.msra.mxu0 0.0
    %124 = vmatprep.subr.mxu0 0.0
    %125 = vmatpush1.msra.mxu0 0.0
    %126 = vmatprep.subr.mxu0 0.0
    %127 = vmatpush1.msra.mxu0 0.0
    %128 = vmatprep.mubr.f32.mxu0 0.0
    %129 = vmatmul.mubr.f32.gmra.mrb[0].mxu0 %v50
    %v130 = vpop.f32.mrb[0].mxu0
    %v131 = vadd.f32 %v37, %v130
    %v132 = vpop.f32.mrb[0].mxu0
    %v133 = vadd.f32 %v37, %v132
    %134 = vmatprep.mubr.f32.mxu0 0.0
    %135 = vmatmul.mubr.f32.gmra.mrb[0].mxu0 %v53
    %v136 = vpop.f32.mrb[0].mxu0
    %v137 = vadd.f32 %v42, %v136
    %v138 = vpop.f32.mrb[0].mxu0
    %v139 = vadd.f32 %v42, %v138
    %140 = vdwg.mxu0
    %141 = vmatprep.subr.mxu0 %v62
    %142 = vmatpush1.msra.mxu0 %v60
    %143 = vmatprep.subr.mxu0 0.0
    %144 = vmatpush1.msra.mxu0 0.0
    %145 = vmatprep.subr.mxu0 0.0
    %146 = vmatpush1.msra.mxu0 0.0
    %147 = vmatprep.subr.mxu0 0.0
    %148 = vmatpush1.msra.mxu0 0.0
    %149 = vmatprep.subr.mxu0 0.0
    %150 = vmatpush1.msra.mxu0 0.0
    %151 = vmatprep.subr.mxu0 0.0
    %152 = vmatpush1.msra.mxu0 0.0
    %153 = vmatprep.subr.mxu0 0.0
    %154 = vmatpush1.msra.mxu0 0.0
    %155 = vmatprep.subr.mxu0 0.0
    %156 = vmatpush1.msra.mxu0 0.0
    %157 = vmatprep.subr.mxu0 0.0
    %158 = vmatpush1.msra.mxu0 0.0
    %159 = vmatprep.subr.mxu0 0.0
    %160 = vmatpush1.msra.mxu0 0.0
    %161 = vmatprep.subr.mxu0 0.0
    %162 = vmatpush1.msra.mxu0 0.0
    %163 = vmatprep.subr.mxu0 0.0
    %164 = vmatpush1.msra.mxu0 0.0
    %165 = vmatprep.subr.mxu0 0.0
    %166 = vmatpush1.msra.mxu0 0.0
    %167 = vmatprep.subr.mxu0 0.0
    %168 = vmatpush1.msra.mxu0 0.0
    %169 = vmatprep.subr.mxu0 0.0
    %170 = vmatpush1.msra.mxu0 0.0
    %171 = vmatprep.subr.mxu0 0.0
    %172 = vmatpush1.msra.mxu0 0.0
    %173 = vmatprep.subr.mxu0 0.0
    %174 = vmatpush1.msra.mxu0 0.0
    %175 = vmatprep.subr.mxu0 0.0
    %176 = vmatpush1.msra.mxu0 0.0
    %177 = vmatprep.subr.mxu0 0.0
    %178 = vmatpush1.msra.mxu0 0.0
    %179 = vmatprep.subr.mxu0 0.0
    %180 = vmatpush1.msra.mxu0 0.0
    %181 = vmatprep.subr.mxu0 0.0
    %182 = vmatpush1.msra.mxu0 0.0
    %183 = vmatprep.subr.mxu0 0.0
    %184 = vmatpush1.msra.mxu0 0.0
    %185 = vmatprep.subr.mxu0 0.0
    %186 = vmatpush1.msra.mxu0 0.0
    %187 = vmatprep.subr.mxu0 0.0
    %188 = vmatpush1.msra.mxu0 0.0
    %189 = vmatprep.subr.mxu0 0.0
    %190 = vmatpush1.msra.mxu0 0.0
    %191 = vmatprep.subr.mxu0 0.0
    %192 = vmatpush1.msra.mxu0 0.0
    %193 = vmatprep.subr.mxu0 0.0
    %194 = vmatpush1.msra.mxu0 0.0
    %195 = vmatprep.subr.mxu0 0.0
    %196 = vmatpush1.msra.mxu0 0.0
    %197 = vmatprep.subr.mxu0 0.0
    %198 = vmatpush1.msra.mxu0 0.0
    %199 = vmatprep.subr.mxu0 0.0
    %200 = vmatpush1.msra.mxu0 0.0
    %201 = vmatprep.subr.mxu0 0.0
    %202 = vmatpush1.msra.mxu0 0.0
    %203 = vmatprep.subr.mxu0 0.0
    %204 = vmatpush1.msra.mxu0 0.0
    %205 = vmatprep.mubr.f32.mxu0 0.0
    %206 = vmatmul.mubr.f32.gmra.mrb[0].mxu0 %v50
    %v207 = vpop.f32.mrb[0].mxu0
    %v208 = vadd.f32 %v37, %v207
    %v209 = vpop.f32.mrb[0].mxu0
    %v210 = vadd.f32 %v37, %v209
    %211 = vmatprep.mubr.f32.mxu0 0.0
    %212 = vmatmul.mubr.f32.gmra.mrb[0].mxu0 %v53
    %v213 = vpop.f32.mrb[0].mxu0
    %v214 = vadd.f32 %v42, %v213
    %v215 = vpop.f32.mrb[0].mxu0
    %v216 = vadd.f32 %v42, %v215
    %217 = vdwg.mxu0
    %v218 = vmul.f32 %v131, 0.001
    %v219 = vmul.f32 %v133, 0.001
    %v220 = vmul.f32 %v208, 0.001
    %v221 = vmul.f32 %v210, 0.001
    %v222 = vmul.f32 %v137, 0.001
    %v223 = vmul.f32 %v139, 0.001
    %v224 = vmul.f32 %v214, 0.001
    %v225 = vmul.f32 %v216, 0.001
    %v226 = vmax.f32 %v131, %v218
    %v227 = vmax.f32 %v133, %v219
    %v228 = vmax.f32 %v208, %v220
    %v229 = vmax.f32 %v210, %v221
    %v230 = vmax.f32 %v137, %v222
    %v231 = vmax.f32 %v139, %v223
    %v232 = vmax.f32 %v214, %v224
    %v233 = vmax.f32 %v216, %v225
    %v234 = vld [vmem:[%s3] sm:$0xff]
    %v235 = vld [vmem:[%s3 + $0x8] sm:$0xff]
    %v236 = vld [vmem:[%s4] sm:$0xff]
    %v237 = vld [vmem:[%s4 + $0x8] sm:$0xff]
    %239 = vset.pattern.permute.xlu0 0
    %240 = vperm.xlu0 %239, %v236
    %v241 = vpop.permute.xlu0 %240
    %244 = vset.pattern.permute.xlu0 0
    %245 = vperm.xlu0 %244, %v237
    %v246 = vpop.permute.xlu0 %245
    %vm248 = vcmask 130048
    %v250 = vsel %vm248, %v234, 0
    %v253 = vsel %vm248, %v235, 0
    %255 = vmatprep.subr.mxu0 %v227
    %256 = vmatpush1.msra.mxu0 %v226
    %257 = vmatprep.subr.mxu0 %v231
    %258 = vmatpush1.msra.mxu0 %v230
    %259 = vmatprep.subr.mxu0 0.0
    %260 = vmatpush1.msra.mxu0 0.0
    %261 = vmatprep.subr.mxu0 0.0
    %262 = vmatpush1.msra.mxu0 0.0
    %263 = vmatprep.subr.mxu0 0.0
    %264 = vmatpush1.msra.mxu0 0.0
    %265 = vmatprep.subr.mxu0 0.0
    %266 = vmatpush1.msra.mxu0 0.0
    %267 = vmatprep.subr.mxu0 0.0
    %268 = vmatpush1.msra.mxu0 0.0
    %269 = vmatprep.subr.mxu0 0.0
    %270 = vmatpush1.msra.mxu0 0.0
    %271 = vmatprep.subr.mxu0 0.0
    %272 = vmatpush1.msra.mxu0 0.0
    %273 = vmatprep.subr.mxu0 0.0
    %274 = vmatpush1.msra.mxu0 0.0
    %275 = vmatprep.subr.mxu0 0.0
    %276 = vmatpush1.msra.mxu0 0.0
    %277 = vmatprep.subr.mxu0 0.0
    %278 = vmatpush1.msra.mxu0 0.0
    %279 = vmatprep.subr.mxu0 0.0
    %280 = vmatpush1.msra.mxu0 0.0
    %281 = vmatprep.subr.mxu0 0.0
    %282 = vmatpush1.msra.mxu0 0.0
    %283 = vmatprep.subr.mxu0 0.0
    %284 = vmatpush1.msra.mxu0 0.0
    %285 = vmatprep.subr.mxu0 0.0
    %286 = vmatpush1.msra.mxu0 0.0
    %287 = vmatprep.subr.mxu0 0.0
    %288 = vmatpush1.msra.mxu0 0.0
    %289 = vmatprep.subr.mxu0 0.0
    %290 = vmatpush1.msra.mxu0 0.0
    %291 = vmatprep.subr.mxu0 0.0
    %292 = vmatpush1.msra.mxu0 0.0
    %293 = vmatprep.subr.mxu0 0.0
    %294 = vmatpush1.msra.mxu0 0.0
    %295 = vmatprep.subr.mxu0 0.0
    %296 = vmatpush1.msra.mxu0 0.0
    %297 = vmatprep.subr.mxu0 0.0
    %298 = vmatpush1.msra.mxu0 0.0
    %299 = vmatprep.subr.mxu0 0.0
    %300 = vmatpush1.msra.mxu0 0.0
    %301 = vmatprep.subr.mxu0 0.0
    %302 = vmatpush1.msra.mxu0 0.0
    %303 = vmatprep.subr.mxu0 0.0
    %304 = vmatpush1.msra.mxu0 0.0
    %305 = vmatprep.subr.mxu0 0.0
    %306 = vmatpush1.msra.mxu0 0.0
    %307 = vmatprep.subr.mxu0 0.0
    %308 = vmatpush1.msra.mxu0 0.0
    %309 = vmatprep.subr.mxu0 0.0
    %310 = vmatpush1.msra.mxu0 0.0
    %311 = vmatprep.subr.mxu0 0.0
    %312 = vmatpush1.msra.mxu0 0.0
    %313 = vmatprep.subr.mxu0 0.0
    %314 = vmatpush1.msra.mxu0 0.0
    %315 = vmatprep.subr.mxu0 0.0
    %316 = vmatpush1.msra.mxu0 0.0
    %317 = vmatprep.subr.mxu0 0.0
    %318 = vmatpush1.msra.mxu0 0.0
    %319 = vmatprep.mubr.f32.mxu0 0.0
    %320 = vmatmul.mubr.f32.gmra.mrb[0].mxu0 %v250
    %v321 = vpop.f32.mrb[0].mxu0
    %v322 = vadd.f32 %v241, %v321
    %v323 = vpop.f32.mrb[0].mxu0
    %v324 = vadd.f32 %v241, %v323
    %325 = vmatprep.mubr.f32.mxu0 0.0
    %326 = vmatmul.mubr.f32.gmra.mrb[0].mxu0 %v253
    %v327 = vpop.f32.mrb[0].mxu0
    %v328 = vadd.f32 %v246, %v327
    %v329 = vpop.f32.mrb[0].mxu0
    %v330 = vadd.f32 %v246, %v329
    %331 = vdwg.mxu0
    %332 = vmatprep.subr.mxu0 %v229
    %333 = vmatpush1.msra.mxu0 %v228
    %334 = vmatprep.subr.mxu0 %v233
    %335 = vmatpush1.msra.mxu0 %v232
    %336 = vmatprep.subr.mxu0 0.0
    %337 = vmatpush1.msra.mxu0 0.0
    %338 = vmatprep.subr.mxu0 0.0
    %339 = vmatpush1.msra.mxu0 0.0
    %340 = vmatprep.subr.mxu0 0.0
    %341 = vmatpush1.msra.mxu0 0.0
    %342 = vmatprep.subr.mxu0 0.0
    %343 = vmatpush1.msra.mxu0 0.0
    %344 = vmatprep.subr.mxu0 0.0
    %345 = vmatpush1.msra.mxu0 0.0
    %346 = vmatprep.subr.mxu0 0.0
    %347 = vmatpush1.msra.mxu0 0.0
    %348 = vmatprep.subr.mxu0 0.0
    %349 = vmatpush1.msra.mxu0 0.0
    %350 = vmatprep.subr.mxu0 0.0
    %351 = vmatpush1.msra.mxu0 0.0
    %352 = vmatprep.subr.mxu0 0.0
    %353 = vmatpush1.msra.mxu0 0.0
    %354 = vmatprep.subr.mxu0 0.0
    %355 = vmatpush1.msra.mxu0 0.0
    %356 = vmatprep.subr.mxu0 0.0
    %357 = vmatpush1.msra.mxu0 0.0
    %358 = vmatprep.subr.mxu0 0.0
    %359 = vmatpush1.msra.mxu0 0.0
    %360 = vmatprep.subr.mxu0 0.0
    %361 = vmatpush1.msra.mxu0 0.0
    %362 = vmatprep.subr.mxu0 0.0
    %363 = vmatpush1.msra.mxu0 0.0
    %364 = vmatprep.subr.mxu0 0.0
    %365 = vmatpush1.msra.mxu0 0.0
    %366 = vmatprep.subr.mxu0 0.0
    %367 = vmatpush1.msra.mxu0 0.0
    %368 = vmatprep.subr.mxu0 0.0
    %369 = vmatpush1.msra.mxu0 0.0
    %370 = vmatprep.subr.mxu0 0.0
    %371 = vmatpush1.msra.mxu0 0.0
    %372 = vmatprep.subr.mxu0 0.0
    %373 = vmatpush1.msra.mxu0 0.0
    %374 = vmatprep.subr.mxu0 0.0
    %375 = vmatpush1.msra.mxu0 0.0
    %376 = vmatprep.subr.mxu0 0.0
    %377 = vmatpush1.msra.mxu0 0.0
    %378 = vmatprep.subr.mxu0 0.0
    %379 = vmatpush1.msra.mxu0 0.0
    %380 = vmatprep.subr.mxu0 0.0
    %381 = vmatpush1.msra.mxu0 0.0
    %382 = vmatprep.subr.mxu0 0.0
    %383 = vmatpush1.msra.mxu0 0.0
    %384 = vmatprep.subr.mxu0 0.0
    %385 = vmatpush1.msra.mxu0 0.0
    %386 = vmatprep.subr.mxu0 0.0
    %387 = vmatpush1.msra.mxu0 0.0
    %388 = vmatprep.subr.mxu0 0.0
    %389 = vmatpush1.msra.mxu0 0.0
    %390 = vmatprep.subr.mxu0 0.0
    %391 = vmatpush1.msra.mxu0 0.0
    %392 = vmatprep.subr.mxu0 0.0
    %393 = vmatpush1.msra.mxu0 0.0
    %394 = vmatprep.subr.mxu0 0.0
    %395 = vmatpush1.msra.mxu0 0.0
    %396 = vmatprep.mubr.f32.mxu0 0.0
    %397 = vmatmul.mubr.f32.gmra.mrb[0].mxu0 %v250
    %v398 = vpop.f32.mrb[0].mxu0
    %v399 = vadd.f32 %v241, %v398
    %v400 = vpop.f32.mrb[0].mxu0
    %v401 = vadd.f32 %v241, %v400
    %402 = vmatprep.mubr.f32.mxu0 0.0
    %403 = vmatmul.mubr.f32.gmra.mrb[0].mxu0 %v253
    %v404 = vpop.f32.mrb[0].mxu0
    %v405 = vadd.f32 %v246, %v404
    %v406 = vpop.f32.mrb[0].mxu0
    %v407 = vadd.f32 %v246, %v406
    %408 = vdwg.mxu0
    %v409 = vmul.f32 %v322, 0.001
    %v410 = vmul.f32 %v324, 0.001
    %v411 = vmul.f32 %v399, 0.001
    %v412 = vmul.f32 %v401, 0.001
    %v413 = vmul.f32 %v328, 0.001
    %v414 = vmul.f32 %v330, 0.001
    %v415 = vmul.f32 %v405, 0.001
    %v416 = vmul.f32 %v407, 0.001
    %v417 = vmax.f32 %v322, %v409
    %v418 = vmax.f32 %v324, %v410
    %v419 = vmax.f32 %v399, %v411
    %v420 = vmax.f32 %v401, %v412
    %v421 = vmax.f32 %v328, %v413
    %v422 = vmax.f32 %v330, %v414
    %v423 = vmax.f32 %v405, %v415
    %v424 = vmax.f32 %v407, %v416
    %v425 = vld [vmem:[%s5] sm:$0x1]
    %s426 = sld [smem:[#allocation2]]
    %v427 = vstv %s426
    %v429 = vsel %vm248, %v425, 0
    %431 = vmatprep.subr.mxu0 %v418
    %432 = vmatpush1.msra.mxu0 %v417
    %433 = vmatprep.subr.mxu0 %v422
    %434 = vmatpush1.msra.mxu0 %v421
    %435 = vmatprep.subr.mxu0 0.0
    %436 = vmatpush1.msra.mxu0 0.0
    %437 = vmatprep.subr.mxu0 0.0
    %438 = vmatpush1.msra.mxu0 0.0
    %439 = vmatprep.subr.mxu0 0.0
    %440 = vmatpush1.msra.mxu0 0.0
    %441 = vmatprep.subr.mxu0 0.0
    %442 = vmatpush1.msra.mxu0 0.0
    %443 = vmatprep.subr.mxu0 0.0
    %444 = vmatpush1.msra.mxu0 0.0
    %445 = vmatprep.subr.mxu0 0.0
    %446 = vmatpush1.msra.mxu0 0.0
    %447 = vmatprep.subr.mxu0 0.0
    %448 = vmatpush1.msra.mxu0 0.0
    %449 = vmatprep.subr.mxu0 0.0
    %450 = vmatpush1.msra.mxu0 0.0
    %451 = vmatprep.subr.mxu0 0.0
    %452 = vmatpush1.msra.mxu0 0.0
    %453 = vmatprep.subr.mxu0 0.0
    %454 = vmatpush1.msra.mxu0 0.0
    %455 = vmatprep.subr.mxu0 0.0
    %456 = vmatpush1.msra.mxu0 0.0
    %457 = vmatprep.subr.mxu0 0.0
    %458 = vmatpush1.msra.mxu0 0.0
    %459 = vmatprep.subr.mxu0 0.0
    %460 = vmatpush1.msra.mxu0 0.0
    %461 = vmatprep.subr.mxu0 0.0
    %462 = vmatpush1.msra.mxu0 0.0
    %463 = vmatprep.subr.mxu0 0.0
    %464 = vmatpush1.msra.mxu0 0.0
    %465 = vmatprep.subr.mxu0 0.0
    %466 = vmatpush1.msra.mxu0 0.0
    %467 = vmatprep.subr.mxu0 0.0
    %468 = vmatpush1.msra.mxu0 0.0
    %469 = vmatprep.subr.mxu0 0.0
    %470 = vmatpush1.msra.mxu0 0.0
    %471 = vmatprep.subr.mxu0 0.0
    %472 = vmatpush1.msra.mxu0 0.0
    %473 = vmatprep.subr.mxu0 0.0
    %474 = vmatpush1.msra.mxu0 0.0
    %475 = vmatprep.subr.mxu0 0.0
    %476 = vmatpush1.msra.mxu0 0.0
    %477 = vmatprep.subr.mxu0 0.0
    %478 = vmatpush1.msra.mxu0 0.0
    %479 = vmatprep.subr.mxu0 0.0
    %480 = vmatpush1.msra.mxu0 0.0
    %481 = vmatprep.subr.mxu0 0.0
    %482 = vmatpush1.msra.mxu0 0.0
    %483 = vmatprep.subr.mxu0 0.0
    %484 = vmatpush1.msra.mxu0 0.0
    %485 = vmatprep.subr.mxu0 0.0
    %486 = vmatpush1.msra.mxu0 0.0
    %487 = vmatprep.subr.mxu0 0.0
    %488 = vmatpush1.msra.mxu0 0.0
    %489 = vmatprep.subr.mxu0 0.0
    %490 = vmatpush1.msra.mxu0 0.0
    %491 = vmatprep.subr.mxu0 0.0
    %492 = vmatpush1.msra.mxu0 0.0
    %493 = vmatprep.subr.mxu0 0.0
    %494 = vmatpush1.msra.mxu0 0.0
    %495 = vmatprep.mubr.f32.mxu0 0.0
    %496 = vmatmul.mubr.f32.gmra.mrb[0].mxu0 %v429
    %v497 = vpop.f32.mrb[0].mxu0
    %v498 = vadd.f32 %v427, %v497
    %v499 = vpop.f32.mrb[0].mxu0
    %v500 = vadd.f32 %v427, %v499
    %501 = vdwg.mxu0
    %502 = vmatprep.subr.mxu0 %v420
    %503 = vmatpush1.msra.mxu0 %v419
    %504 = vmatprep.subr.mxu0 %v424
    %505 = vmatpush1.msra.mxu0 %v423
    %506 = vmatprep.subr.mxu0 0.0
    %507 = vmatpush1.msra.mxu0 0.0
    %508 = vmatprep.subr.mxu0 0.0
    %509 = vmatpush1.msra.mxu0 0.0
    %510 = vmatprep.subr.mxu0 0.0
    %511 = vmatpush1.msra.mxu0 0.0
    %512 = vmatprep.subr.mxu0 0.0
    %513 = vmatpush1.msra.mxu0 0.0
    %514 = vmatprep.subr.mxu0 0.0
    %515 = vmatpush1.msra.mxu0 0.0
    %516 = vmatprep.subr.mxu0 0.0
    %517 = vmatpush1.msra.mxu0 0.0
    %518 = vmatprep.subr.mxu0 0.0
    %519 = vmatpush1.msra.mxu0 0.0
    %520 = vmatprep.subr.mxu0 0.0
    %521 = vmatpush1.msra.mxu0 0.0
    %522 = vmatprep.subr.mxu0 0.0
    %523 = vmatpush1.msra.mxu0 0.0
    %524 = vmatprep.subr.mxu0 0.0
    %525 = vmatpush1.msra.mxu0 0.0
    %526 = vmatprep.subr.mxu0 0.0
    %527 = vmatpush1.msra.mxu0 0.0
    %528 = vmatprep.subr.mxu0 0.0
    %529 = vmatpush1.msra.mxu0 0.0
    %530 = vmatprep.subr.mxu0 0.0
    %531 = vmatpush1.msra.mxu0 0.0
    %532 = vmatprep.subr.mxu0 0.0
    %533 = vmatpush1.msra.mxu0 0.0
    %534 = vmatprep.subr.mxu0 0.0
    %535 = vmatpush1.msra.mxu0 0.0
    %536 = vmatprep.subr.mxu0 0.0
    %537 = vmatpush1.msra.mxu0 0.0
    %538 = vmatprep.subr.mxu0 0.0
    %539 = vmatpush1.msra.mxu0 0.0
    %540 = vmatprep.subr.mxu0 0.0
    %541 = vmatpush1.msra.mxu0 0.0
    %542 = vmatprep.subr.mxu0 0.0
    %543 = vmatpush1.msra.mxu0 0.0
    %544 = vmatprep.subr.mxu0 0.0
    %545 = vmatpush1.msra.mxu0 0.0
    %546 = vmatprep.subr.mxu0 0.0
    %547 = vmatpush1.msra.mxu0 0.0
    %548 = vmatprep.subr.mxu0 0.0
    %549 = vmatpush1.msra.mxu0 0.0
    %550 = vmatprep.subr.mxu0 0.0
    %551 = vmatpush1.msra.mxu0 0.0
    %552 = vmatprep.subr.mxu0 0.0
    %553 = vmatpush1.msra.mxu0 0.0
    %554 = vmatprep.subr.mxu0 0.0
    %555 = vmatpush1.msra.mxu0 0.0
    %556 = vmatprep.subr.mxu0 0.0
    %557 = vmatpush1.msra.mxu0 0.0
    %558 = vmatprep.subr.mxu0 0.0
    %559 = vmatpush1.msra.mxu0 0.0
    %560 = vmatprep.subr.mxu0 0.0
    %561 = vmatpush1.msra.mxu0 0.0
    %562 = vmatprep.subr.mxu0 0.0
    %563 = vmatpush1.msra.mxu0 0.0
    %564 = vmatprep.subr.mxu0 0.0
    %565 = vmatpush1.msra.mxu0 0.0
    %566 = vmatprep.mubr.f32.mxu0 0.0
    %567 = vmatmul.mubr.f32.gmra.mrb[0].mxu0 %v429
    %v568 = vpop.f32.mrb[0].mxu0
    %v569 = vadd.f32 %v427, %v568
    %v570 = vpop.f32.mrb[0].mxu0
    %v571 = vadd.f32 %v427, %v570
    %572 = vdwg.mxu0
    %v573 = vtanh.pop %v498
    %v574 = vtanh.pop %v500
    %v575 = vtanh.pop %v569
    %v576 = vtanh.pop %v571
    %v577 = vmul.f32 %v573, 2.0
    %v578 = vmul.f32 %v574, 2.0
    %v579 = vmul.f32 %v575, 2.0
    %v580 = vmul.f32 %v576, 2.0
    %v585 = vcombine.low %v577, %v578
    %v586 = vcombine.low %v579, %v580
    %v588 = vunpack.c.l.s4 1966171168
    %v589 = vunpack.c.0.s8 %v588
    %v590 = vlaneseq
    %v591 = vshrl.u32 %v590, 7
    %v592 = vsub.s32 %v589, %v591
    %v593 = vrot.slane %v585, %v592
    %v595 = vunpack.c.l.s4 1966171168
    %v596 = vunpack.c.0.s8 %v595
    %v597 = vlaneseq
    %v598 = vshrl.u32 %v597, 7
    %v599 = vsub.s32 %v596, %v598
    %v600 = vrot.slane %v586, %v599
    %v601 = vcombine.low %v593, %v600
    %v603 = vunpack.c.l.s4 1966171168
    %v604 = vunpack.c.0.s8 %v603
    %v605 = vlaneseq
    %v606 = vshrl.u32 %v605, 7
    %v607 = vsub.s32 %v604, %v606
    %v608 = vrot.slane %v601, %v607
    %v610 = vlaneseq
    %vm611 = vcmp.ge.s32.totalorder %v610, 0
    %vm612 = vcmp.lt.s32.totalorder %v610, 512
    %vm613 = vmand %vm611, %vm612
    %614 = vst.msk [vmem:[#allocation3] sm:$0xf] %vm613, %v608
    // Predicated region
    $region30: #{tpu_custom_call.1} parent=1 // pred_check
      _
    $region31: #{tpu_custom_call.1} parent=1 // pred_check_branch
      %616 = sbr.rel (0) target = $region33
    $region32: #{tpu_custom_call.1} parent=1 // pred_region
      %s618 = ssub.s32 64, 64
      %619 = vsyncadd [#allocation4], %s618
      %s621 = sshll.u32 [#allocation3], 4
      %s622 = int_to_ptr.vmem [resolvable:$true] %s621
      %624 = dma.vmem_to_hbm [thread:$0]  %s622, 64, %s7, [#allocation4]
    $region33: #{tpu_custom_call.1} parent=1 // pred_fallthru
      _
    // Predicated region
    $region34: #{tpu_custom_call.1} parent=1 // pred_check
      _
    $region35: #{tpu_custom_call.1} parent=1 // pred_check_branch
      %626 = sbr.rel (0) target = $region37
    $region36: #{tpu_custom_call.1} parent=1 // pred_region
      %627 = dma.done [#allocation4], 64
    $region37: #{tpu_custom_call.1} parent=1 // pred_fallthru
      _
    %628 = vsyncpa [#allocation4], 1

</llo_original>
